<compile_context>
chip_gen: v7x
topology: tpu7x:2x2x1
jax: 0.10.0
libtpu: 0.0.40
codegen_flags: <defaults>
</compile_context>

<pallas_src>
import jax
import jax.numpy as jnp
from jax.experimental import pallas as pl
from jax.experimental.pallas import tpu as pltpu


IN_FEATURES = 64 * 4 * 4   # 1024
LANE = 128
TB_MAX = 2048              # batch tile (rows); ~8 MiB f32 x-tile, double buffered
NEG_BIG = -1e30            # bias for padded logit lanes -> exp() underflows to 0 in f32


def _round_up(n, m):
    return ((n + m - 1) // m) * m


def _pick_batch_tile(B):
    """Batch tile size.  Guarantees >= 2 grid steps for mid-size batches so the
    DMA pipeline (and v7x's two TensorCores) are actually used; tiny batches
    use a single full-extent tile (block dims == array dims is always legal)."""
    if B <= 256:
        return B
    half = -(-B // 2)                      # ceil(B / 2)
    return min(TB_MAX, _round_up(half, 8))


def _domain_classifier_kernel(x_ref, w1_ref, b1_ref, w2_ref, b2_ref, o_ref):
    """Fused (x @ W1 + b1) -> ReLU -> (@ W2 + b2) -> log_softmax over one batch tile.

    x_ref : (TB, 1024) f32    (cast to bf16 on the VPU just before the MXU)
    w1_ref: (1024, HP) bf16   (hidden zero-padded to HP, multiple of 128)
    b1_ref: (1, HP)    f32    (zero-padded)
    w2_ref: (HP, 128)  bf16   (rows >= hidden and cols >= 2 are zero)
    b2_ref: (1, 128)   f32    (cols >= 2 are -1e30 so padded lanes drop out)
    o_ref : (TB, 128)  bf16   (lane-dense output; wrapper slices [:, :2])
    """
    # First linear: bf16 operands, f32 accumulation on the MXU.  The f32->bf16
    # cast of the x tile is VPU work hidden under the (dominant) x DMA.
    x_bf16 = x_ref[...].astype(jnp.bfloat16)
    h = jnp.dot(x_bf16, w1_ref[...], preferred_element_type=jnp.float32)
    h = jnp.maximum(h + b1_ref[...], 0.0)                       # (TB, HP) f32, ReLU

    # Second linear: bf16 operands (keeps v5e off the slow f32 MXU path),
    # f32 accumulation, padded to 128 output lanes.
    logits = jnp.dot(h.astype(jnp.bfloat16), w2_ref[...],
                     preferred_element_type=jnp.float32)
    logits = logits + b2_ref[...]                               # padded lanes -> ~-1e30

    # Numerically stable log-softmax in f32; padded lanes contribute exp() == 0.
    m = jnp.max(logits, axis=-1, keepdims=True)
    shifted = logits - m
    lse = jnp.log(jnp.sum(jnp.exp(shifted), axis=-1, keepdims=True))
    o_ref[...] = (shifted - lse).astype(o_ref.dtype)


def prepare_params(w1, b1, w2, b2):
    """Pad/cast the weights ONCE (hoisted out of the per-call path).
    w1: (1024, hidden) f32, b1: (hidden,), w2: (hidden, 2), b2: (2,)."""
    hidden = w1.shape[1]
    HP = max(LANE, _round_up(hidden, LANE))
    w1_p = jnp.pad(w1, ((0, 0), (0, HP - hidden))).astype(jnp.bfloat16)
    b1_p = jnp.pad(b1.reshape(1, hidden), ((0, 0), (0, HP - hidden))).astype(jnp.float32)
    w2_p = jnp.pad(w2, ((0, HP - hidden), (0, LANE - 2))).astype(jnp.bfloat16)
    b2_p = jnp.pad(b2.reshape(1, 2), ((0, 0), (0, LANE - 2)),
                   constant_values=NEG_BIG).astype(jnp.float32)
    return w1_p, b1_p, w2_p, b2_p


@jax.jit
def domain_classifier_forward(x_nchw, params):
    """x_nchw: (B, 64, 4, 4) f32.  params: output of prepare_params().
    Returns (B, 2) log-probabilities (f32)."""
    w1_p, b1_p, w2_p, b2_p = params
    B = x_nchw.shape[0]
    HP = w1_p.shape[1]
    x_flat = x_nchw.reshape(B, IN_FEATURES)       # metadata-only, same as torch .view

    TB = _pick_batch_tile(B)
    grid = (pl.cdiv(B, TB),)                      # ragged last tile; no batch pad

    cost = pl.CostEstimate(
        flops=2 * B * (IN_FEATURES * HP + HP * LANE),
        transcendentals=B * (LANE + 1),
        bytes_accessed=(x_flat.size * 4 + w1_p.size * 2 + b1_p.size * 4
                        + w2_p.size * 2 + b2_p.size * 4 + B * LANE * 2),
    )

    out_pad = pl.pallas_call(
        _domain_classifier_kernel,
        out_shape=jax.ShapeDtypeStruct((B, LANE), jnp.bfloat16),
        grid_spec=pltpu.PrefetchScalarGridSpec(
            num_scalar_prefetch=0,
            grid=grid,
            in_specs=[
                pl.BlockSpec((TB, IN_FEATURES), lambda i: (i, 0)),   # x: tiled on batch
                pl.BlockSpec((IN_FEATURES, HP), lambda i: (0, 0)),   # W1: resident
                pl.BlockSpec((1, HP), lambda i: (0, 0)),             # b1
                pl.BlockSpec((HP, LANE), lambda i: (0, 0)),          # W2 (padded)
                pl.BlockSpec((1, LANE), lambda i: (0, 0)),           # b2 (padded)
            ],
            out_specs=pl.BlockSpec((TB, LANE), lambda i: (i, 0)),    # lane-dense output
        ),
        compiler_params=pltpu.CompilerParams(
            dimension_semantics=("parallel",),    # v7x: shard batch tiles over 2 TCs
            vmem_limit_bytes=32 * 1024 * 1024,
        ),
        cost_estimate=cost,
    )(x_flat, w1_p, b1_p, w2_p, b2_p)

    return out_pad[:B, :2].astype(jnp.float32)


def init_params(key, hidden):
    """Deterministic init mimicking torch.nn.Linear defaults (uniform +/- 1/sqrt(fan_in)).
    Weights stored as (in, out) so the kernel does x @ W directly."""
    k1, k2, k3, k4 = jax.random.split(key, 4)
    bound1 = 1.0 / jnp.sqrt(jnp.float32(IN_FEATURES))
    bound2 = 1.0 / jnp.sqrt(jnp.float32(hidden))
    w1 = jax.random.uniform(k1, (IN_FEATURES, hidden), jnp.float32, -bound1, bound1)
    b1 = jax.random.uniform(k2, (hidden,), jnp.float32, -bound1, bound1)
    w2 = jax.random.uniform(k3, (hidden, 2), jnp.float32, -bound2, bound2)
    b2 = jax.random.uniform(k4, (2,), jnp.float32, -bound2, bound2)
    return w1, b1, w2, b2


def _reference_forward(x_nchw, w1, b1, w2, b2):
    """Pure-JAX reference with the same bf16 operand casts as the kernel
    (accumulation and log-softmax in f32)."""
    B = x_nchw.shape[0]
    x = x_nchw.reshape(B, IN_FEATURES).astype(jnp.bfloat16).astype(jnp.float32)
    w1f = w1.astype(jnp.bfloat16).astype(jnp.float32)
    h = jnp.maximum(x @ w1f + b1[None, :], 0.0)
    hf = h.astype(jnp.bfloat16).astype(jnp.float32)
    w2f = w2.astype(jnp.bfloat16).astype(jnp.float32)
    logits = hf @ w2f + b2[None, :]
    return jax.nn.log_softmax(logits, axis=-1)


if __name__ == "__main__":
    key = jax.random.PRNGKey(0)
    k_x, k_p = jax.random.split(key)

    B = 2
    hidden = 32
    x = jax.random.normal(k_x, (B, 64, 4, 4), jnp.float32)   # NCHW, as PyTorch would feed
    w1, b1, w2, b2 = init_params(k_p, hidden)

    params = prepare_params(w1, b1, w2, b2)                  # padded/cast once
    out = domain_classifier_forward(x, params)
    out = jax.block_until_ready(out)

    # Sanity: shape (B, 2), rows are (bf16-stored) log-probabilities, matches reference.
    assert out.shape == (B, 2)
    row_sums = jnp.sum(jnp.exp(out), axis=-1)
    assert bool(jnp.all(jnp.abs(row_sums - 1.0) < 2e-2))     # bf16 output quantization
    ref = _reference_forward(x, w1, b1, w2, b2)
    assert bool(jnp.all(jnp.abs(out - ref) < 2e-2))

    print("KERNEL_OK")
</pallas_src>

<mosaic_0001>
module attributes {stable_mosaic.version = 11 : i64} {
  func.func @_domain_classifier_kernel(%arg0: i32, %arg1: memref<2x1024xf32, #tpu.memory_space<vmem>>, %arg2: memref<1024x128xbf16, #tpu.memory_space<vmem>>, %arg3: memref<1x128xf32, #tpu.memory_space<vmem>>, %arg4: memref<128x128xbf16, #tpu.memory_space<vmem>>, %arg5: memref<1x128xf32, #tpu.memory_space<vmem>>, %arg6: memref<2x128xbf16, #tpu.memory_space<vmem>>) attributes {dimension_semantics = [#tpu.dimension_semantics<parallel>], iteration_bounds = array<i64: 1>, scalar_prefetch = 0 : i64, scratch_operands = 0 : i64, tpu.core_type = #tpu.core_type<tc>, window_params = [{transform_indices = @transform_0, window_bounds = array<i64: 2, 1024>}, {pipeline_mode = #tpu.pipeline_mode<synchronous>, transform_indices = @transform_1, window_bounds = array<i64: 1024, 128>}, {pipeline_mode = #tpu.pipeline_mode<synchronous>, transform_indices = @transform_2, window_bounds = array<i64: 1, 128>}, {pipeline_mode = #tpu.pipeline_mode<synchronous>, transform_indices = @transform_3, window_bounds = array<i64: 128, 128>}, {pipeline_mode = #tpu.pipeline_mode<synchronous>, transform_indices = @transform_4, window_bounds = array<i64: 1, 128>}, {transform_indices = @transform_5, window_bounds = array<i64: 2, 128>}]} {
    %c0 = arith.constant 0 : index
    %c0_0 = arith.constant 0 : index
    %0 = vector.load %arg1[%c0, %c0_0] : memref<2x1024xf32, #tpu.memory_space<vmem>>, vector<2x1024xf32>
    %1 = arith.truncf %0 : vector<2x1024xf32> to vector<2x1024xbf16>
    %c0_1 = arith.constant 0 : index
    %c0_2 = arith.constant 0 : index
    %2 = vector.load %arg2[%c0_1, %c0_2] : memref<1024x128xbf16, #tpu.memory_space<vmem>>, vector<1024x128xbf16>
    %cst = arith.constant dense<0.000000e+00> : vector<2x128xf32>
    %3 = tpu.matmul %1, %2, %cst {dimension_numbers = #tpu.dot_dimension_numbers<[1], [0], [0], [1], [0, 0, 1, 1], [], []>} : vector<2x1024xbf16>, vector<1024x128xbf16>, vector<2x128xf32> -> vector<2x128xf32>
    %c0_3 = arith.constant 0 : index
    %c0_4 = arith.constant 0 : index
    %4 = vector.load %arg3[%c0_3, %c0_4] : memref<1x128xf32, #tpu.memory_space<vmem>>, vector<1x128xf32>
    %5 = vector.broadcast %4 : vector<1x128xf32> to vector<2x128xf32>
    %6 = arith.addf %3, %5 : vector<2x128xf32>
    %cst_5 = arith.constant 0.000000e+00 : f32
    %7 = vector.broadcast %cst_5 : f32 to vector<2x128xf32>
    %8 = arith.maximumf %6, %7 : vector<2x128xf32>
    %9 = arith.truncf %8 : vector<2x128xf32> to vector<2x128xbf16>
    %c0_6 = arith.constant 0 : index
    %c0_7 = arith.constant 0 : index
    %10 = vector.load %arg4[%c0_6, %c0_7] : memref<128x128xbf16, #tpu.memory_space<vmem>>, vector<128x128xbf16>
    %cst_8 = arith.constant dense<0.000000e+00> : vector<2x128xf32>
    %11 = tpu.matmul %9, %10, %cst_8 {dimension_numbers = #tpu.dot_dimension_numbers<[1], [0], [0], [1], [0, 0, 1, 1], [], []>} : vector<2x128xbf16>, vector<128x128xbf16>, vector<2x128xf32> -> vector<2x128xf32>
    %c0_9 = arith.constant 0 : index
    %c0_10 = arith.constant 0 : index
    %12 = vector.load %arg5[%c0_9, %c0_10] : memref<1x128xf32, #tpu.memory_space<vmem>>, vector<1x128xf32>
    %13 = vector.broadcast %12 : vector<1x128xf32> to vector<2x128xf32>
    %14 = arith.addf %11, %13 : vector<2x128xf32>
    %cst_11 = arith.constant dense<0xFF800000> : vector<2xf32>
    %15 = vector.multi_reduction <maximumf>, %14, %cst_11 [1] : vector<2x128xf32> to vector<2xf32>
    %16 = vector.shape_cast %15 : vector<2xf32> to vector<2x1xf32>
    %17 = vector.broadcast %16 : vector<2x1xf32> to vector<2x128xf32>
    %18 = arith.subf %14, %17 : vector<2x128xf32>
    %19 = math.exp %18 : vector<2x128xf32>
    %cst_12 = arith.constant dense<0.000000e+00> : vector<2xf32>
    %20 = vector.multi_reduction <add>, %19, %cst_12 [1] : vector<2x128xf32> to vector<2xf32>
    %21 = vector.shape_cast %20 : vector<2xf32> to vector<2x1xf32>
    %22 = math.log %21 : vector<2x1xf32>
    %23 = vector.broadcast %22 : vector<2x1xf32> to vector<2x128xf32>
    %24 = arith.subf %18, %23 : vector<2x128xf32>
    %25 = arith.truncf %24 : vector<2x128xf32> to vector<2x128xbf16>
    %c0_13 = arith.constant 0 : index
    %c0_14 = arith.constant 0 : index
    %26 = vector.load %arg6[%c0_13, %c0_14] : memref<2x128xbf16, #tpu.memory_space<vmem>>, vector<2x128xbf16>
    tpu.vector_store %arg6[%c0_13, %c0_14], %25 {strides = array<i32>} : memref<2x128xbf16, #tpu.memory_space<vmem>>, vector<2x128xbf16>,
    return
  }
  func.func @transform_0(%arg0: i32) -> (i32, i32) {
    %c0_i32 = arith.constant 0 : i32
    %c0_i32_0 = arith.constant 0 : i32
    return %arg0, %c0_i32 : i32, i32
  }
  func.func @transform_1(%arg0: i32) -> (i32, i32) {
    %c0_i32 = arith.constant 0 : i32
    %c0_i32_0 = arith.constant 0 : i32
    %c0_i32_1 = arith.constant 0 : i32
    return %c0_i32, %c0_i32_0 : i32, i32
  }
  func.func @transform_2(%arg0: i32) -> (i32, i32) {
    %c0_i32 = arith.constant 0 : i32
    %c0_i32_0 = arith.constant 0 : i32
    %c0_i32_1 = arith.constant 0 : i32
    return %c0_i32, %c0_i32_0 : i32, i32
  }
  func.func @transform_3(%arg0: i32) -> (i32, i32) {
    %c0_i32 = arith.constant 0 : i32
    %c0_i32_0 = arith.constant 0 : i32
    %c0_i32_1 = arith.constant 0 : i32
    return %c0_i32, %c0_i32_0 : i32, i32
  }
  func.func @transform_4(%arg0: i32) -> (i32, i32) {
    %c0_i32 = arith.constant 0 : i32
    %c0_i32_0 = arith.constant 0 : i32
    %c0_i32_1 = arith.constant 0 : i32
    return %c0_i32, %c0_i32_0 : i32, i32
  }
  func.func @transform_5(%arg0: i32) -> (i32, i32) {
    %c0_i32 = arith.constant 0 : i32
    %c0_i32_0 = arith.constant 0 : i32
    return %arg0, %c0_i32 : i32, i32
  }
}

</mosaic_0001>

<llo_original>
// kernel: domain_classifier_forward.1
$region0: #{domain_classifier_forward.1}
  #allocation0 [shape = 'u32[]', space=smem, size = 0x4, offset = 0x4, fixed_abs, tag = 'smem constant byte address 0x4 - core index']
  #allocation1 [shape = 'u32[144,128]{1,0:T(1,128)}', space=vmem, size = 0x12000, scoped, tag = 'internal scratch']
  %s0 = inlined_call_operand.vmem [shape: f32[2,1024], index: 0, kind: input, shape index: {}]
  %s1 = inlined_call_operand.vmem [shape: bf16[1024,128], index: 1, kind: input, shape index: {}]
  %s2 = inlined_call_operand.vmem [shape: f32[1,128], index: 2, kind: input, shape index: {}]
  %s3 = inlined_call_operand.vmem [shape: bf16[128,128], index: 3, kind: input, shape index: {}]
  %s4 = inlined_call_operand.vmem [shape: f32[1,128], index: 4, kind: input, shape index: {}]
  %s5 = inlined_call_operand.vmem [shape: bf16[2,128], index: 5, kind: output, shape index: {}]
  %s6 = sld [smem:[#allocation0]]
  $region30: #{domain_classifier_forward.1} parent=0
    _
  %s8 = ssub.s32 1, %s6
  %s9 = scalar_select 0, %s8, %s6
  // Predicated region
  $region2: #{domain_classifier_forward.1} parent=0 // pred_check
    _
  $region3: #{domain_classifier_forward.1} parent=0 // pred_check_branch
    %11 = sbr.rel (0) target = $region5
  $region4: #{domain_classifier_forward.1} parent=0 // pred_region
    _
  $region5: #{domain_classifier_forward.1} parent=0 // pred_fallthru
    _
  // Predicated region
  $region6: #{domain_classifier_forward.1} parent=0 // pred_check
    _
  $region7: #{domain_classifier_forward.1} parent=0 // pred_check_branch
    %13 = sbr.rel (0) target = $region9
  $region8: #{domain_classifier_forward.1} parent=0 // pred_region
    _
  $region9: #{domain_classifier_forward.1} parent=0 // pred_fallthru
    _
  // Predicated region
  $region10: #{domain_classifier_forward.1} parent=0 // pred_check
    _
  $region11: #{domain_classifier_forward.1} parent=0 // pred_check_branch
    %15 = sbr.rel (0) target = $region13
  $region12: #{domain_classifier_forward.1} parent=0 // pred_region
    _
  $region13: #{domain_classifier_forward.1} parent=0 // pred_fallthru
    _
  // Predicated region
  $region14: #{domain_classifier_forward.1} parent=0 // pred_check
    _
  $region15: #{domain_classifier_forward.1} parent=0 // pred_check_branch
    %17 = sbr.rel (0) target = $region17
  $region16: #{domain_classifier_forward.1} parent=0 // pred_region
    _
  $region17: #{domain_classifier_forward.1} parent=0 // pred_fallthru
    _
  // Predicated region
  $region18: #{domain_classifier_forward.1} parent=0 // pred_check
    _
  $region19: #{domain_classifier_forward.1} parent=0 // pred_check_branch
    %19 = sbr.rel (0) target = $region21
  $region20: #{domain_classifier_forward.1} parent=0 // pred_region
    _
  $region21: #{domain_classifier_forward.1} parent=0 // pred_fallthru
    _
  %v21 = vld [vmem:[%s0] sm:$0xff]
  %v22 = vld [vmem:[%s0 + $0x8] sm:$0xff]
  %v25 = vcombine.high %v21, %v21
  %v27 = vunpack.c.l.s4 1983009808
  %v28 = vunpack.c.0.s8 %v27
  %v29 = vlaneseq
  %v30 = vshrl.u32 %v29, 7
  %v31 = vsub.s32 %v28, %v30
  %v32 = vrot.slane %v21, %v31
  %v34 = vunpack.c.l.s4 1983009808
  %v35 = vunpack.c.0.s8 %v34
  %v36 = vlaneseq
  %v37 = vshrl.u32 %v36, 7
  %v38 = vsub.s32 %v35, %v37
  %v39 = vrot.slane %v25, %v38
  %v40 = vcombine.high %v32, %v32
  %v41 = vcombine.high %v39, %v39
  %v42 = vcombine.high %v22, %v22
  %v44 = vunpack.c.l.s4 1983009808
  %v45 = vunpack.c.0.s8 %v44
  %v46 = vlaneseq
  %v47 = vshrl.u32 %v46, 7
  %v48 = vsub.s32 %v45, %v47
  %v49 = vrot.slane %v22, %v48
  %v51 = vunpack.c.l.s4 1983009808
  %v52 = vunpack.c.0.s8 %v51
  %v53 = vlaneseq
  %v54 = vshrl.u32 %v53, 7
  %v55 = vsub.s32 %v52, %v54
  %v56 = vrot.slane %v42, %v55
  %v57 = vcombine.high %v49, %v49
  %v58 = vcombine.high %v56, %v56
  %v67 = vpack.c.bf16 %v32, %v32
  %v68 = vpack.c.bf16 %v40, %v40
  %v69 = vpack.c.bf16 %v39, %v39
  %v70 = vpack.c.bf16 %v41, %v41
  %v71 = vpack.c.bf16 %v49, %v49
  %v72 = vpack.c.bf16 %v57, %v57
  %v73 = vpack.c.bf16 %v56, %v56
  %v74 = vpack.c.bf16 %v58, %v58
  %v75 = vld [vmem:[%s1] sm:$0xf]
  %v76 = vld [vmem:[%s1 + $0x4] sm:$0xf]
  %v77 = vld [vmem:[%s1 + $0x8] sm:$0xf]
  %v78 = vld [vmem:[%s1 + $0xc] sm:$0xf]
  %v79 = vld [vmem:[%s1 + $0x10] sm:$0xf]
  %v80 = vld [vmem:[%s1 + $0x14] sm:$0xf]
  %v81 = vld [vmem:[%s1 + $0x18] sm:$0xf]
  %v82 = vld [vmem:[%s1 + $0x1c] sm:$0xf]
  %v83 = vld [vmem:[%s1 + $0x20] sm:$0xf]
  %v84 = vld [vmem:[%s1 + $0x24] sm:$0xf]
  %v85 = vld [vmem:[%s1 + $0x28] sm:$0xf]
  %v86 = vld [vmem:[%s1 + $0x2c] sm:$0xf]
  %v87 = vld [vmem:[%s1 + $0x30] sm:$0xf]
  %v88 = vld [vmem:[%s1 + $0x34] sm:$0xf]
  %v89 = vld [vmem:[%s1 + $0x38] sm:$0xf]
  %v90 = vld [vmem:[%s1 + $0x3c] sm:$0xf]
  %v91 = vld [vmem:[%s1 + $0x40] sm:$0xf]
  %v92 = vld [vmem:[%s1 + $0x44] sm:$0xf]
  %v93 = vld [vmem:[%s1 + $0x48] sm:$0xf]
  %v94 = vld [vmem:[%s1 + $0x4c] sm:$0xf]
  %v95 = vld [vmem:[%s1 + $0x50] sm:$0xf]
  %v96 = vld [vmem:[%s1 + $0x54] sm:$0xf]
  %v97 = vld [vmem:[%s1 + $0x58] sm:$0xf]
  %v98 = vld [vmem:[%s1 + $0x5c] sm:$0xf]
  %v99 = vld [vmem:[%s1 + $0x60] sm:$0xf]
  %v100 = vld [vmem:[%s1 + $0x64] sm:$0xf]
  %v101 = vld [vmem:[%s1 + $0x68] sm:$0xf]
  %v102 = vld [vmem:[%s1 + $0x6c] sm:$0xf]
  %v103 = vld [vmem:[%s1 + $0x70] sm:$0xf]
  %v104 = vld [vmem:[%s1 + $0x74] sm:$0xf]
  %v105 = vld [vmem:[%s1 + $0x78] sm:$0xf]
  %v106 = vld [vmem:[%s1 + $0x7c] sm:$0xf]
  %v107 = vld [vmem:[%s1 + $0x80] sm:$0xf]
  %v108 = vld [vmem:[%s1 + $0x84] sm:$0xf]
  %v109 = vld [vmem:[%s1 + $0x88] sm:$0xf]
  %v110 = vld [vmem:[%s1 + $0x8c] sm:$0xf]
  %v111 = vld [vmem:[%s1 + $0x90] sm:$0xf]
  %v112 = vld [vmem:[%s1 + $0x94] sm:$0xf]
  %v113 = vld [vmem:[%s1 + $0x98] sm:$0xf]
  %v114 = vld [vmem:[%s1 + $0x9c] sm:$0xf]
  %v115 = vld [vmem:[%s1 + $0xa0] sm:$0xf]
  %v116 = vld [vmem:[%s1 + $0xa4] sm:$0xf]
  %v117 = vld [vmem:[%s1 + $0xa8] sm:$0xf]
  %v118 = vld [vmem:[%s1 + $0xac] sm:$0xf]
  %v119 = vld [vmem:[%s1 + $0xb0] sm:$0xf]
  %v120 = vld [vmem:[%s1 + $0xb4] sm:$0xf]
  %v121 = vld [vmem:[%s1 + $0xb8] sm:$0xf]
  %v122 = vld [vmem:[%s1 + $0xbc] sm:$0xf]
  %v123 = vld [vmem:[%s1 + $0xc0] sm:$0xf]
  %v124 = vld [vmem:[%s1 + $0xc4] sm:$0xf]
  %v125 = vld [vmem:[%s1 + $0xc8] sm:$0xf]
  %v126 = vld [vmem:[%s1 + $0xcc] sm:$0xf]
  %v127 = vld [vmem:[%s1 + $0xd0] sm:$0xf]
  %v128 = vld [vmem:[%s1 + $0xd4] sm:$0xf]
  %v129 = vld [vmem:[%s1 + $0xd8] sm:$0xf]
  %v130 = vld [vmem:[%s1 + $0xdc] sm:$0xf]
  %v131 = vld [vmem:[%s1 + $0xe0] sm:$0xf]
  %v132 = vld [vmem:[%s1 + $0xe4] sm:$0xf]
  %v133 = vld [vmem:[%s1 + $0xe8] sm:$0xf]
  %v134 = vld [vmem:[%s1 + $0xec] sm:$0xf]
  %v135 = vld [vmem:[%s1 + $0xf0] sm:$0xf]
  %v136 = vld [vmem:[%s1 + $0xf4] sm:$0xf]
  %v137 = vld [vmem:[%s1 + $0xf8] sm:$0xf]
  %v138 = vld [vmem:[%s1 + $0xfc] sm:$0xf]
  %v139 = vld [vmem:[%s1 + $0x100] sm:$0xf]
  %v140 = vld [vmem:[%s1 + $0x104] sm:$0xf]
  %v141 = vld [vmem:[%s1 + $0x108] sm:$0xf]
  %v142 = vld [vmem:[%s1 + $0x10c] sm:$0xf]
  %v143 = vld [vmem:[%s1 + $0x110] sm:$0xf]
  %v144 = vld [vmem:[%s1 + $0x114] sm:$0xf]
  %v145 = vld [vmem:[%s1 + $0x118] sm:$0xf]
  %v146 = vld [vmem:[%s1 + $0x11c] sm:$0xf]
  %v147 = vld [vmem:[%s1 + $0x120] sm:$0xf]
  %v148 = vld [vmem:[%s1 + $0x124] sm:$0xf]
  %v149 = vld [vmem:[%s1 + $0x128] sm:$0xf]
  %v150 = vld [vmem:[%s1 + $0x12c] sm:$0xf]
  %v151 = vld [vmem:[%s1 + $0x130] sm:$0xf]
  %v152 = vld [vmem:[%s1 + $0x134] sm:$0xf]
  %v153 = vld [vmem:[%s1 + $0x138] sm:$0xf]
  %v154 = vld [vmem:[%s1 + $0x13c] sm:$0xf]
  %v155 = vld [vmem:[%s1 + $0x140] sm:$0xf]
  %v156 = vld [vmem:[%s1 + $0x144] sm:$0xf]
  %v157 = vld [vmem:[%s1 + $0x148] sm:$0xf]
  %v158 = vld [vmem:[%s1 + $0x14c] sm:$0xf]
  %v159 = vld [vmem:[%s1 + $0x150] sm:$0xf]
  %v160 = vld [vmem:[%s1 + $0x154] sm:$0xf]
  %v161 = vld [vmem:[%s1 + $0x158] sm:$0xf]
  %v162 = vld [vmem:[%s1 + $0x15c] sm:$0xf]
  %v163 = vld [vmem:[%s1 + $0x160] sm:$0xf]
  %v164 = vld [vmem:[%s1 + $0x164] sm:$0xf]
  %v165 = vld [vmem:[%s1 + $0x168] sm:$0xf]
  %v166 = vld [vmem:[%s1 + $0x16c] sm:$0xf]
  %v167 = vld [vmem:[%s1 + $0x170] sm:$0xf]
  %v168 = vld [vmem:[%s1 + $0x174] sm:$0xf]
  %v169 = vld [vmem:[%s1 + $0x178] sm:$0xf]
  %v170 = vld [vmem:[%s1 + $0x17c] sm:$0xf]
  %v171 = vld [vmem:[%s1 + $0x180] sm:$0xf]
  %v172 = vld [vmem:[%s1 + $0x184] sm:$0xf]
  %v173 = vld [vmem:[%s1 + $0x188] sm:$0xf]
  %v174 = vld [vmem:[%s1 + $0x18c] sm:$0xf]
  %v175 = vld [vmem:[%s1 + $0x190] sm:$0xf]
  %v176 = vld [vmem:[%s1 + $0x194] sm:$0xf]
  %v177 = vld [vmem:[%s1 + $0x198] sm:$0xf]
  %v178 = vld [vmem:[%s1 + $0x19c] sm:$0xf]
  %v179 = vld [vmem:[%s1 + $0x1a0] sm:$0xf]
  %v180 = vld [vmem:[%s1 + $0x1a4] sm:$0xf]
  %v181 = vld [vmem:[%s1 + $0x1a8] sm:$0xf]
  %v182 = vld [vmem:[%s1 + $0x1ac] sm:$0xf]
  %v183 = vld [vmem:[%s1 + $0x1b0] sm:$0xf]
  %v184 = vld [vmem:[%s1 + $0x1b4] sm:$0xf]
  %v185 = vld [vmem:[%s1 + $0x1b8] sm:$0xf]
  %v186 = vld [vmem:[%s1 + $0x1bc] sm:$0xf]
  %v187 = vld [vmem:[%s1 + $0x1c0] sm:$0xf]
  %v188 = vld [vmem:[%s1 + $0x1c4] sm:$0xf]
  %v189 = vld [vmem:[%s1 + $0x1c8] sm:$0xf]
  %v190 = vld [vmem:[%s1 + $0x1cc] sm:$0xf]
  %v191 = vld [vmem:[%s1 + $0x1d0] sm:$0xf]
  %v192 = vld [vmem:[%s1 + $0x1d4] sm:$0xf]
  %v193 = vld [vmem:[%s1 + $0x1d8] sm:$0xf]
  %v194 = vld [vmem:[%s1 + $0x1dc] sm:$0xf]
  %v195 = vld [vmem:[%s1 + $0x1e0] sm:$0xf]
  %v196 = vld [vmem:[%s1 + $0x1e4] sm:$0xf]
  %v197 = vld [vmem:[%s1 + $0x1e8] sm:$0xf]
  %v198 = vld [vmem:[%s1 + $0x1ec] sm:$0xf]
  %v199 = vld [vmem:[%s1 + $0x1f0] sm:$0xf]
  %v200 = vld [vmem:[%s1 + $0x1f4] sm:$0xf]
  %v201 = vld [vmem:[%s1 + $0x1f8] sm:$0xf]
  %v202 = vld [vmem:[%s1 + $0x1fc] sm:$0xf]
  %v203 = vld [vmem:[%s2] sm:$0x1]
  %v205 = vlaneseq
  %v206 = vshrl.u32 %v205, 7
  %v207 = vsub.s32 0, %v206
  %v208 = vrot.slane %v203, %v207
  %v338 = vunpack.c.l.b16 %v75
  %v339 = vunpack.c.l.b16 %v76
  %v340 = vunpack.c.l.b16 %v77
  %v341 = vunpack.c.l.b16 %v78
  %v342 = vunpack.c.l.b16 %v79
  %v343 = vunpack.c.l.b16 %v80
  %v344 = vunpack.c.l.b16 %v81
  %v345 = vunpack.c.l.b16 %v82
  %v346 = vunpack.c.l.b16 %v83
  %v347 = vunpack.c.l.b16 %v84
  %v348 = vunpack.c.l.b16 %v85
  %v349 = vunpack.c.l.b16 %v86
  %v350 = vunpack.c.l.b16 %v87
  %v351 = vunpack.c.l.b16 %v88
  %v352 = vunpack.c.l.b16 %v89
  %v353 = vunpack.c.l.b16 %v90
  %v354 = vunpack.c.l.b16 %v91
  %v355 = vunpack.c.l.b16 %v92
  %v356 = vunpack.c.l.b16 %v93
  %v357 = vunpack.c.l.b16 %v94
  %v358 = vunpack.c.l.b16 %v95
  %v359 = vunpack.c.l.b16 %v96
  %v360 = vunpack.c.l.b16 %v97
  %v361 = vunpack.c.l.b16 %v98
  %v362 = vunpack.c.l.b16 %v99
  %v363 = vunpack.c.l.b16 %v100
  %v364 = vunpack.c.l.b16 %v101
  %v365 = vunpack.c.l.b16 %v102
  %v366 = vunpack.c.l.b16 %v103
  %v367 = vunpack.c.l.b16 %v104
  %v368 = vunpack.c.l.b16 %v105
  %v369 = vunpack.c.l.b16 %v106
  %v370 = vunpack.c.l.b16 %v107
  %v371 = vunpack.c.l.b16 %v108
  %v372 = vunpack.c.l.b16 %v109
  %v373 = vunpack.c.l.b16 %v110
  %v374 = vunpack.c.l.b16 %v111
  %v375 = vunpack.c.l.b16 %v112
  %v376 = vunpack.c.l.b16 %v113
  %v377 = vunpack.c.l.b16 %v114
  %v378 = vunpack.c.l.b16 %v115
  %v379 = vunpack.c.l.b16 %v116
  %v380 = vunpack.c.l.b16 %v117
  %v381 = vunpack.c.l.b16 %v118
  %v382 = vunpack.c.l.b16 %v119
  %v383 = vunpack.c.l.b16 %v120
  %v384 = vunpack.c.l.b16 %v121
  %v385 = vunpack.c.l.b16 %v122
  %v386 = vunpack.c.l.b16 %v123
  %v387 = vunpack.c.l.b16 %v124
  %v388 = vunpack.c.l.b16 %v125
  %v389 = vunpack.c.l.b16 %v126
  %v390 = vunpack.c.l.b16 %v127
  %v391 = vunpack.c.l.b16 %v128
  %v392 = vunpack.c.l.b16 %v129
  %v393 = vunpack.c.l.b16 %v130
  %v394 = vunpack.c.l.b16 %v131
  %v395 = vunpack.c.l.b16 %v132
  %v396 = vunpack.c.l.b16 %v133
  %v397 = vunpack.c.l.b16 %v134
  %v398 = vunpack.c.l.b16 %v135
  %v399 = vunpack.c.l.b16 %v136
  %v400 = vunpack.c.l.b16 %v137
  %v401 = vunpack.c.l.b16 %v138
  %v402 = vunpack.c.l.b16 %v139
  %v403 = vunpack.c.l.b16 %v140
  %v404 = vunpack.c.l.b16 %v141
  %v405 = vunpack.c.l.b16 %v142
  %v406 = vunpack.c.l.b16 %v143
  %v407 = vunpack.c.l.b16 %v144
  %v408 = vunpack.c.l.b16 %v145
  %v409 = vunpack.c.l.b16 %v146
  %v410 = vunpack.c.l.b16 %v147
  %v411 = vunpack.c.l.b16 %v148
  %v412 = vunpack.c.l.b16 %v149
  %v413 = vunpack.c.l.b16 %v150
  %v414 = vunpack.c.l.b16 %v151
  %v415 = vunpack.c.l.b16 %v152
  %v416 = vunpack.c.l.b16 %v153
  %v417 = vunpack.c.l.b16 %v154
  %v418 = vunpack.c.l.b16 %v155
  %v419 = vunpack.c.l.b16 %v156
  %v420 = vunpack.c.l.b16 %v157
  %v421 = vunpack.c.l.b16 %v158
  %v422 = vunpack.c.l.b16 %v159
  %v423 = vunpack.c.l.b16 %v160
  %v424 = vunpack.c.l.b16 %v161
  %v425 = vunpack.c.l.b16 %v162
  %v426 = vunpack.c.l.b16 %v163
  %v427 = vunpack.c.l.b16 %v164
  %v428 = vunpack.c.l.b16 %v165
  %v429 = vunpack.c.l.b16 %v166
  %v430 = vunpack.c.l.b16 %v167
  %v431 = vunpack.c.l.b16 %v168
  %v432 = vunpack.c.l.b16 %v169
  %v433 = vunpack.c.l.b16 %v170
  %v434 = vunpack.c.l.b16 %v171
  %v435 = vunpack.c.l.b16 %v172
  %v436 = vunpack.c.l.b16 %v173
  %v437 = vunpack.c.l.b16 %v174
  %v438 = vunpack.c.l.b16 %v175
  %v439 = vunpack.c.l.b16 %v176
  %v440 = vunpack.c.l.b16 %v177
  %v441 = vunpack.c.l.b16 %v178
  %v442 = vunpack.c.l.b16 %v179
  %v443 = vunpack.c.l.b16 %v180
  %v444 = vunpack.c.l.b16 %v181
  %v445 = vunpack.c.l.b16 %v182
  %v446 = vunpack.c.l.b16 %v183
  %v447 = vunpack.c.l.b16 %v184
  %v448 = vunpack.c.l.b16 %v185
  %v449 = vunpack.c.l.b16 %v186
  %v450 = vunpack.c.l.b16 %v187
  %v451 = vunpack.c.l.b16 %v188
  %v452 = vunpack.c.l.b16 %v189
  %v453 = vunpack.c.l.b16 %v190
  %v454 = vunpack.c.l.b16 %v191
  %v455 = vunpack.c.l.b16 %v192
  %v456 = vunpack.c.l.b16 %v193
  %v457 = vunpack.c.l.b16 %v194
  %v458 = vunpack.c.l.b16 %v195
  %v459 = vunpack.c.l.b16 %v196
  %v460 = vunpack.c.l.b16 %v197
  %v461 = vunpack.c.l.b16 %v198
  %v462 = vunpack.c.l.b16 %v199
  %v463 = vunpack.c.l.b16 %v200
  %v464 = vunpack.c.l.b16 %v201
  %v465 = vunpack.c.l.b16 %v202
  %v466 = vpack.c.b16 %v339, %v338
  %v467 = vpack.c.b16 %v341, %v340
  %v468 = vpack.c.b16 %v343, %v342
  %v469 = vpack.c.b16 %v345, %v344
  %v470 = vpack.c.b16 %v347, %v346
  %v471 = vpack.c.b16 %v349, %v348
  %v472 = vpack.c.b16 %v351, %v350
  %v473 = vpack.c.b16 %v353, %v352
  %v474 = vpack.c.b16 %v355, %v354
  %v475 = vpack.c.b16 %v357, %v356
  %v476 = vpack.c.b16 %v359, %v358
  %v477 = vpack.c.b16 %v361, %v360
  %v478 = vpack.c.b16 %v363, %v362
  %v479 = vpack.c.b16 %v365, %v364
  %v480 = vpack.c.b16 %v367, %v366
  %v481 = vpack.c.b16 %v369, %v368
  %v482 = vpack.c.b16 %v371, %v370
  %v483 = vpack.c.b16 %v373, %v372
  %v484 = vpack.c.b16 %v375, %v374
  %v485 = vpack.c.b16 %v377, %v376
  %v486 = vpack.c.b16 %v379, %v378
  %v487 = vpack.c.b16 %v381, %v380
  %v488 = vpack.c.b16 %v383, %v382
  %v489 = vpack.c.b16 %v385, %v384
  %v490 = vpack.c.b16 %v387, %v386
  %v491 = vpack.c.b16 %v389, %v388
  %v492 = vpack.c.b16 %v391, %v390
  %v493 = vpack.c.b16 %v393, %v392
  %v494 = vpack.c.b16 %v395, %v394
  %v495 = vpack.c.b16 %v397, %v396
  %v496 = vpack.c.b16 %v399, %v398
  %v497 = vpack.c.b16 %v401, %v400
  %v498 = vpack.c.b16 %v403, %v402
  %v499 = vpack.c.b16 %v405, %v404
  %v500 = vpack.c.b16 %v407, %v406
  %v501 = vpack.c.b16 %v409, %v408
  %v502 = vpack.c.b16 %v411, %v410
  %v503 = vpack.c.b16 %v413, %v412
  %v504 = vpack.c.b16 %v415, %v414
  %v505 = vpack.c.b16 %v417, %v416
  %v506 = vpack.c.b16 %v419, %v418
  %v507 = vpack.c.b16 %v421, %v420
  %v508 = vpack.c.b16 %v423, %v422
  %v509 = vpack.c.b16 %v425, %v424
  %v510 = vpack.c.b16 %v427, %v426
  %v511 = vpack.c.b16 %v429, %v428
  %v512 = vpack.c.b16 %v431, %v430
  %v513 = vpack.c.b16 %v433, %v432
  %v514 = vpack.c.b16 %v435, %v434
  %v515 = vpack.c.b16 %v437, %v436
  %v516 = vpack.c.b16 %v439, %v438
  %v517 = vpack.c.b16 %v441, %v440
  %v518 = vpack.c.b16 %v443, %v442
  %v519 = vpack.c.b16 %v445, %v444
  %v520 = vpack.c.b16 %v447, %v446
  %v521 = vpack.c.b16 %v449, %v448
  %v522 = vpack.c.b16 %v451, %v450
  %v523 = vpack.c.b16 %v453, %v452
  %v524 = vpack.c.b16 %v455, %v454
  %v525 = vpack.c.b16 %v457, %v456
  %v526 = vpack.c.b16 %v459, %v458
  %v527 = vpack.c.b16 %v461, %v460
  %v528 = vpack.c.b16 %v463, %v462
  %v529 = vpack.c.b16 %v465, %v464
  %594 = vmatprep.subr.bf16.mxu0 0
  %595 = vmatpush1.bf16.msra.mxu0 %v466
  %596 = vmatprep.subr.bf16.mxu0 0
  %597 = vmatpush1.bf16.msra.mxu0 %v467
  %598 = vmatprep.subr.bf16.mxu0 0
  %599 = vmatpush1.bf16.msra.mxu0 %v468
  %600 = vmatprep.subr.bf16.mxu0 0
  %601 = vmatpush1.bf16.msra.mxu0 %v469
  %602 = vmatprep.subr.bf16.mxu0 0
  %603 = vmatpush1.bf16.msra.mxu0 %v470
  %604 = vmatprep.subr.bf16.mxu0 0
  %605 = vmatpush1.bf16.msra.mxu0 %v471
  %606 = vmatprep.subr.bf16.mxu0 0
  %607 = vmatpush1.bf16.msra.mxu0 %v472
  %608 = vmatprep.subr.bf16.mxu0 0
  %609 = vmatpush1.bf16.msra.mxu0 %v473
  %610 = vmatprep.subr.bf16.mxu0 0
  %611 = vmatpush1.bf16.msra.mxu0 %v474
  %612 = vmatprep.subr.bf16.mxu0 0
  %613 = vmatpush1.bf16.msra.mxu0 %v475
  %614 = vmatprep.subr.bf16.mxu0 0
  %615 = vmatpush1.bf16.msra.mxu0 %v476
  %616 = vmatprep.subr.bf16.mxu0 0
  %617 = vmatpush1.bf16.msra.mxu0 %v477
  %618 = vmatprep.subr.bf16.mxu0 0
  %619 = vmatpush1.bf16.msra.mxu0 %v478
  %620 = vmatprep.subr.bf16.mxu0 0
  %621 = vmatpush1.bf16.msra.mxu0 %v479
  %622 = vmatprep.subr.bf16.mxu0 0
  %623 = vmatpush1.bf16.msra.mxu0 %v480
  %624 = vmatprep.subr.bf16.mxu0 0
  %625 = vmatpush1.bf16.msra.mxu0 %v481
  %626 = vmatprep.mubr.bf16.mxu0 %v68
  %627 = vmatmul.mubr.bf16.gmra.mrb[0].mxu0 %v67
  %v628 = vpop.f32.mrb[0].mxu0
  %v629 = vadd.f32 %v208, %v628
  %v630 = vpop.f32.mrb[0].mxu0
  %v631 = vpop.f32.mrb[0].mxu0
  %v632 = vpop.f32.mrb[0].mxu0
  %633 = vdwg.mxu0
  %634 = vmatprep.subr.bf16.mxu0 0
  %635 = vmatpush1.bf16.msra.mxu0 %v482
  %636 = vmatprep.subr.bf16.mxu0 0
  %637 = vmatpush1.bf16.msra.mxu0 %v483
  %638 = vmatprep.subr.bf16.mxu0 0
  %639 = vmatpush1.bf16.msra.mxu0 %v484
  %640 = vmatprep.subr.bf16.mxu0 0
  %641 = vmatpush1.bf16.msra.mxu0 %v485
  %642 = vmatprep.subr.bf16.mxu0 0
  %643 = vmatpush1.bf16.msra.mxu0 %v486
  %644 = vmatprep.subr.bf16.mxu0 0
  %645 = vmatpush1.bf16.msra.mxu0 %v487
  %646 = vmatprep.subr.bf16.mxu0 0
  %647 = vmatpush1.bf16.msra.mxu0 %v488
  %648 = vmatprep.subr.bf16.mxu0 0
  %649 = vmatpush1.bf16.msra.mxu0 %v489
  %650 = vmatprep.subr.bf16.mxu0 0
  %651 = vmatpush1.bf16.msra.mxu0 %v490
  %652 = vmatprep.subr.bf16.mxu0 0
  %653 = vmatpush1.bf16.msra.mxu0 %v491
  %654 = vmatprep.subr.bf16.mxu0 0
  %655 = vmatpush1.bf16.msra.mxu0 %v492
  %656 = vmatprep.subr.bf16.mxu0 0
  %657 = vmatpush1.bf16.msra.mxu0 %v493
  %658 = vmatprep.subr.bf16.mxu0 0
  %659 = vmatpush1.bf16.msra.mxu0 %v494
  %660 = vmatprep.subr.bf16.mxu0 0
  %661 = vmatpush1.bf16.msra.mxu0 %v495
  %662 = vmatprep.subr.bf16.mxu0 0
  %663 = vmatpush1.bf16.msra.mxu0 %v496
  %664 = vmatprep.subr.bf16.mxu0 0
  %665 = vmatpush1.bf16.msra.mxu0 %v497
  %666 = vmatprep.mubr.bf16.mxu0 %v70
  %667 = vmatmul.mubr.bf16.gmra.mrb[0].mxu0 %v69
  %v668 = vpop.f32.mrb[0].mxu0
  %v669 = vadd.f32 %v629, %v668
  %v670 = vpop.f32.mrb[0].mxu0
  %v671 = vpop.f32.mrb[0].mxu0
  %v672 = vpop.f32.mrb[0].mxu0
  %673 = vdwg.mxu0
  %674 = vmatprep.subr.bf16.mxu0 0
  %675 = vmatpush1.bf16.msra.mxu0 %v498
  %676 = vmatprep.subr.bf16.mxu0 0
  %677 = vmatpush1.bf16.msra.mxu0 %v499
  %678 = vmatprep.subr.bf16.mxu0 0
  %679 = vmatpush1.bf16.msra.mxu0 %v500
  %680 = vmatprep.subr.bf16.mxu0 0
  %681 = vmatpush1.bf16.msra.mxu0 %v501
  %682 = vmatprep.subr.bf16.mxu0 0
  %683 = vmatpush1.bf16.msra.mxu0 %v502
  %684 = vmatprep.subr.bf16.mxu0 0
  %685 = vmatpush1.bf16.msra.mxu0 %v503
  %686 = vmatprep.subr.bf16.mxu0 0
  %687 = vmatpush1.bf16.msra.mxu0 %v504
  %688 = vmatprep.subr.bf16.mxu0 0
  %689 = vmatpush1.bf16.msra.mxu0 %v505
  %690 = vmatprep.subr.bf16.mxu0 0
  %691 = vmatpush1.bf16.msra.mxu0 %v506
  %692 = vmatprep.subr.bf16.mxu0 0
  %693 = vmatpush1.bf16.msra.mxu0 %v507
  %694 = vmatprep.subr.bf16.mxu0 0
  %695 = vmatpush1.bf16.msra.mxu0 %v508
  %696 = vmatprep.subr.bf16.mxu0 0
  %697 = vmatpush1.bf16.msra.mxu0 %v509
  %698 = vmatprep.subr.bf16.mxu0 0
  %699 = vmatpush1.bf16.msra.mxu0 %v510
  %700 = vmatprep.subr.bf16.mxu0 0
  %701 = vmatpush1.bf16.msra.mxu0 %v511
  %702 = vmatprep.subr.bf16.mxu0 0
  %703 = vmatpush1.bf16.msra.mxu0 %v512
  %704 = vmatprep.subr.bf16.mxu0 0
  %705 = vmatpush1.bf16.msra.mxu0 %v513
  %706 = vmatprep.mubr.bf16.mxu0 %v72
  %707 = vmatmul.mubr.bf16.gmra.mrb[0].mxu0 %v71
  %v708 = vpop.f32.mrb[0].mxu0
  %v709 = vadd.f32 %v669, %v708
  %v710 = vpop.f32.mrb[0].mxu0
  %v711 = vpop.f32.mrb[0].mxu0
  %v712 = vpop.f32.mrb[0].mxu0
  %713 = vdwg.mxu0
  %714 = vmatprep.subr.bf16.mxu0 0
  %715 = vmatpush1.bf16.msra.mxu0 %v514
  %716 = vmatprep.subr.bf16.mxu0 0
  %717 = vmatpush1.bf16.msra.mxu0 %v515
  %718 = vmatprep.subr.bf16.mxu0 0
  %719 = vmatpush1.bf16.msra.mxu0 %v516
  %720 = vmatprep.subr.bf16.mxu0 0
  %721 = vmatpush1.bf16.msra.mxu0 %v517
  %722 = vmatprep.subr.bf16.mxu0 0
  %723 = vmatpush1.bf16.msra.mxu0 %v518
  %724 = vmatprep.subr.bf16.mxu0 0
  %725 = vmatpush1.bf16.msra.mxu0 %v519
  %726 = vmatprep.subr.bf16.mxu0 0
  %727 = vmatpush1.bf16.msra.mxu0 %v520
  %728 = vmatprep.subr.bf16.mxu0 0
  %729 = vmatpush1.bf16.msra.mxu0 %v521
  %730 = vmatprep.subr.bf16.mxu0 0
  %731 = vmatpush1.bf16.msra.mxu0 %v522
  %732 = vmatprep.subr.bf16.mxu0 0
  %733 = vmatpush1.bf16.msra.mxu0 %v523
  %734 = vmatprep.subr.bf16.mxu0 0
  %735 = vmatpush1.bf16.msra.mxu0 %v524
  %736 = vmatprep.subr.bf16.mxu0 0
  %737 = vmatpush1.bf16.msra.mxu0 %v525
  %738 = vmatprep.subr.bf16.mxu0 0
  %739 = vmatpush1.bf16.msra.mxu0 %v526
  %740 = vmatprep.subr.bf16.mxu0 0
  %741 = vmatpush1.bf16.msra.mxu0 %v527
  %742 = vmatprep.subr.bf16.mxu0 0
  %743 = vmatpush1.bf16.msra.mxu0 %v528
  %744 = vmatprep.subr.bf16.mxu0 0
  %745 = vmatpush1.bf16.msra.mxu0 %v529
  %746 = vmatprep.mubr.bf16.mxu0 %v74
  %747 = vmatmul.mubr.bf16.gmra.mrb[0].mxu0 %v73
  %v748 = vpop.f32.mrb[0].mxu0
  %v749 = vadd.f32 %v709, %v748
  %v750 = vpop.f32.mrb[0].mxu0
  %v751 = vpop.f32.mrb[0].mxu0
  %v752 = vpop.f32.mrb[0].mxu0
  %753 = vdwg.mxu0
  %v754 = vmax.f32 %v749, 0.0
  %v755 = vpack.c.bf16 %v754, %v754
  %v756 = vld [vmem:[%s3] sm:$0xf]
  %v757 = vld [vmem:[%s3 + $0x4] sm:$0xf]
  %v758 = vld [vmem:[%s3 + $0x8] sm:$0xf]
  %v759 = vld [vmem:[%s3 + $0xc] sm:$0xf]
  %v760 = vld [vmem:[%s3 + $0x10] sm:$0xf]
  %v761 = vld [vmem:[%s3 + $0x14] sm:$0xf]
  %v762 = vld [vmem:[%s3 + $0x18] sm:$0xf]
  %v763 = vld [vmem:[%s3 + $0x1c] sm:$0xf]
  %v764 = vld [vmem:[%s3 + $0x20] sm:$0xf]
  %v765 = vld [vmem:[%s3 + $0x24] sm:$0xf]
  %v766 = vld [vmem:[%s3 + $0x28] sm:$0xf]
  %v767 = vld [vmem:[%s3 + $0x2c] sm:$0xf]
  %v768 = vld [vmem:[%s3 + $0x30] sm:$0xf]
  %v769 = vld [vmem:[%s3 + $0x34] sm:$0xf]
  %v770 = vld [vmem:[%s3 + $0x38] sm:$0xf]
  %v771 = vld [vmem:[%s3 + $0x3c] sm:$0xf]
  %v772 = vld [vmem:[%s4] sm:$0x1]
  %v774 = vlaneseq
  %v775 = vshrl.u32 %v774, 7
  %v776 = vsub.s32 0, %v775
  %v777 = vrot.slane %v772, %v776
  %v795 = vunpack.c.l.b16 %v756
  %v796 = vunpack.c.l.b16 %v757
  %v797 = vunpack.c.l.b16 %v758
  %v798 = vunpack.c.l.b16 %v759
  %v799 = vunpack.c.l.b16 %v760
  %v800 = vunpack.c.l.b16 %v761
  %v801 = vunpack.c.l.b16 %v762
  %v802 = vunpack.c.l.b16 %v763
  %v803 = vunpack.c.l.b16 %v764
  %v804 = vunpack.c.l.b16 %v765
  %v805 = vunpack.c.l.b16 %v766
  %v806 = vunpack.c.l.b16 %v767
  %v807 = vunpack.c.l.b16 %v768
  %v808 = vunpack.c.l.b16 %v769
  %v809 = vunpack.c.l.b16 %v770
  %v810 = vunpack.c.l.b16 %v771
  %v811 = vpack.c.b16 %v796, %v795
  %v812 = vpack.c.b16 %v798, %v797
  %v813 = vpack.c.b16 %v800, %v799
  %v814 = vpack.c.b16 %v802, %v801
  %v815 = vpack.c.b16 %v804, %v803
  %v816 = vpack.c.b16 %v806, %v805
  %v817 = vpack.c.b16 %v808, %v807
  %v818 = vpack.c.b16 %v810, %v809
  %827 = vmatprep.subr.bf16.mxu0 0
  %828 = vmatpush1.bf16.msra.mxu0 %v811
  %829 = vmatprep.subr.bf16.mxu0 0
  %830 = vmatpush1.bf16.msra.mxu0 %v812
  %831 = vmatprep.subr.bf16.mxu0 0
  %832 = vmatpush1.bf16.msra.mxu0 %v813
  %833 = vmatprep.subr.bf16.mxu0 0
  %834 = vmatpush1.bf16.msra.mxu0 %v814
  %835 = vmatprep.subr.bf16.mxu0 0
  %836 = vmatpush1.bf16.msra.mxu0 %v815
  %837 = vmatprep.subr.bf16.mxu0 0
  %838 = vmatpush1.bf16.msra.mxu0 %v816
  %839 = vmatprep.subr.bf16.mxu0 0
  %840 = vmatpush1.bf16.msra.mxu0 %v817
  %841 = vmatprep.subr.bf16.mxu0 0
  %842 = vmatpush1.bf16.msra.mxu0 %v818
  %843 = vmatprep.subr.bf16.mxu0 0
  %844 = vmatpush1.bf16.msra.mxu0 0
  %845 = vmatprep.subr.bf16.mxu0 0
  %846 = vmatpush1.bf16.msra.mxu0 0
  %847 = vmatprep.subr.bf16.mxu0 0
  %848 = vmatpush1.bf16.msra.mxu0 0
  %849 = vmatprep.subr.bf16.mxu0 0
  %850 = vmatpush1.bf16.msra.mxu0 0
  %851 = vmatprep.subr.bf16.mxu0 0
  %852 = vmatpush1.bf16.msra.mxu0 0
  %853 = vmatprep.subr.bf16.mxu0 0
  %854 = vmatpush1.bf16.msra.mxu0 0
  %855 = vmatprep.subr.bf16.mxu0 0
  %856 = vmatpush1.bf16.msra.mxu0 0
  %857 = vmatprep.subr.bf16.mxu0 0
  %858 = vmatpush1.bf16.msra.mxu0 0
  %859 = vmatprep.mubr.bf16.mxu0 0
  %860 = vmatmul.mubr.bf16.gmra.mrb[0].mxu0 %v755
  %v861 = vpop.f32.mrb[0].mxu0
  %v862 = vadd.f32 %v777, %v861
  %v863 = vpop.f32.mrb[0].mxu0
  %v864 = vpop.f32.mrb[0].mxu0
  %v865 = vpop.f32.mrb[0].mxu0
  %866 = vdwg.mxu0
  %vm867 = vcmask 1041408
  %v868 = vsel %vm867, %v862, -inf
  %869 = vmax.xlane.f32.xlu0 %v868
  %v870 = vpop.xlane.xlu0 %869
  %v871 = vsub.f32 %v862, %v870
  %v872 = vmul.f32 %v871, 1.442695
  %v873 = vpow.pop %v872
  %v874 = vsel %vm867, %v873, 0.0
  %875 = vadd.xlane.f32.xlu0 %v874
  %v876 = vpop.xlane.xlu0 %875
  %v877 = vlog2.pop %v876
  %v878 = vmul.f32 %v877, 0.6931472
  %v879 = vsub.f32 %v871, %v878
  %v880 = vpack.c.bf16 %v879, %v879
  %881 = vst [vmem:[%s5] sm:$0x1] %v880
  // Predicated region
  $region22: #{domain_classifier_forward.1} parent=0 // pred_check
    _
  $region23: #{domain_classifier_forward.1} parent=0 // pred_check_branch
    %883 = sbr.rel (0) target = $region25
  $region24: #{domain_classifier_forward.1} parent=0 // pred_region
    _
  $region25: #{domain_classifier_forward.1} parent=0 // pred_fallthru
    _
  // Predicated region
  $region26: #{domain_classifier_forward.1} parent=0 // pred_check
    _
  $region27: #{domain_classifier_forward.1} parent=0 // pred_check_branch
    %885 = sbr.rel (0) target = $region29
  $region28: #{domain_classifier_forward.1} parent=0 // pred_region
    _
  $region29: #{domain_classifier_forward.1} parent=0 // pred_fallthru
    _

</llo_original>
